<compile_context>
chip_gen: v7x
topology: tpu7x:2x2x1
jax: 0.10.0
libtpu: 0.0.40
codegen_flags: <defaults>
</compile_context>

<pallas_src>
import functools
import math

import numpy as np
import jax
import jax.numpy as jnp
from jax import lax
from jax.experimental import pallas as pl
from jax.experimental.pallas import tpu as pltpu

# torch.distributions.utils.clamp_probs clamps to [eps, 1 - eps] (f32 eps).
_EPS = float(jnp.finfo(jnp.float32).eps)
_HI = 1.0 - _EPS
_LO_TERM = _EPS * math.log(_EPS)      # p * log(p) at the lower clamp
_HI_TERM = _HI * math.log(_HI)        # p * log(p) at the upper clamp
_LOG_EPS = math.log(_EPS)             # clamp decided on exact log-softmax
_LOG_HI = math.log(_HI)


def _fold_lanes_to_128(x):
    """(1, T) -> (1, 128): pairwise tree-sum of 128-lane chunks (static slices)."""
    t = x.shape[-1]
    chunks = [x[:, j * 128:(j + 1) * 128] for j in range(t // 128)]
    while len(chunks) > 1:
        nxt = [chunks[k] + chunks[k + 1] for k in range(0, len(chunks) - 1, 2)]
        if len(chunks) % 2 == 1:
            nxt.append(chunks[-1])
        chunks = nxt
    return chunks[0]


def _dfl2_kernel(bins_ref, slab_ref, out_ref, *, n_rows, num_bins, ent_scale,
                 uniform, bin0, inv_step):
    i = pl.program_id(0)
    nb = num_bins

    # slab rows 0..B-1 = pred^T (bins on sublanes, rows on lanes); row B = target.
    x = slab_ref[pl.ds(0, nb), :].astype(jnp.float32)        # (B, TN)
    tgt = slab_ref[pl.ds(nb, 1), :].astype(jnp.float32)      # (1, TN)
    tn = x.shape[-1]

    # Columns >= n_rows are the ragged-last-block overhang -> masked out.
    col = i * tn + lax.broadcasted_iota(jnp.int32, (1, tn), 1)
    valid = col < n_rows                                      # (1, TN)

    # --- label = argmin_b |bins_b - target| (first index on ties) ---
    if uniform:
        # bins = bin0 + step*b  ->  nearest bin with ties broken downward.
        row = lax.broadcasted_iota(jnp.int32, (nb, tn), 0)
        u = (tgt - jnp.float32(bin0)) * jnp.float32(inv_step)
        label = jnp.clip(jnp.ceil(u - 0.5), 0.0,
                         float(nb - 1)).astype(jnp.int32)     # (1, TN) int
    else:
        row = lax.broadcasted_iota(jnp.int32, (nb, tn), 0).astype(jnp.float32)
        bins = bins_ref[...].astype(jnp.float32)              # (B, 1)
        dis = jnp.abs(bins - tgt)                             # (B, TN)
        min_dis = jnp.min(dis, axis=0, keepdims=True)
        label = jnp.min(jnp.where(dis == min_dis, row, jnp.float32(nb)),
                        axis=0, keepdims=True)                # (1, TN) f32
    onehot = row == label                                     # (B, TN)

    # --- softmax / log-softmax over bins: one exp pass, one log per column ---
    m = jnp.max(x, axis=0, keepdims=True)                     # (1, TN)
    sh = x - m
    e = jnp.exp(sh)                                           # (B, TN)
    sum_e = jnp.sum(e, axis=0, keepdims=True)                 # (1, TN)
    lse = jnp.log(sum_e)
    logsm = sh - lse                                          # (B, TN)

    # --- clamp_probs(softmax)*log(.) ; clamp branches decided on exact logsm
    #     so the approx reciprocal only scales the 1e-5-weighted mid branch ---
    p = e * pl.reciprocal(sum_e, approx=True)                 # (B, TN)
    plogp = jnp.where(logsm < jnp.float32(_LOG_EPS), jnp.float32(_LO_TERM),
                      jnp.where(logsm > jnp.float32(_LOG_HI), jnp.float32(_HI_TERM),
                                p * logsm))

    # --- fused CE + entropy contribution, ONE cross-sublane reduction ---
    # v_nb = (entropy_weights/B) * p*log(p) - onehot * logsm
    v = jnp.float32(ent_scale) * plogp - jnp.where(onehot, logsm, jnp.float32(0.0))
    col_sum = jnp.sum(v, axis=0, keepdims=True)               # (1, TN)
    col_sum = jnp.where(valid, col_sum, jnp.float32(0.0))

    # --- lane-dense (8,128) partial block for this grid step ---
    part = _fold_lanes_to_128(col_sum)                        # (1, 128)
    sub = lax.broadcasted_iota(jnp.int32, (8, 128), 0)
    blk = jnp.where(sub == 0, jnp.broadcast_to(part, (8, 128)), jnp.float32(0.0))
    out_ref[...] = blk[None]


@functools.partial(jax.jit,
                   static_argnames=("entropy_weights", "loss_weight", "tile_n",
                                    "uniform", "bin0", "inv_step"))
def _dfl2_impl(pred, target, bins, *, entropy_weights, loss_weight, tile_n,
               uniform, bin0, inv_step):
    n, b = pred.shape
    assert target.shape == (n,) and bins.shape == (b,)
    assert b < (1 << 24)   # float-encoded tie-break index must stay exact

    # One fused HBM pass: lane-dense slab (B+1, N) = [pred^T ; target row].
    # TODO(synk): if the producer can emit pred directly as (B, N), this
    # transpose pass disappears entirely.
    slab_dt = jnp.result_type(pred.dtype, target.dtype)
    slab = jnp.concatenate([pred.T.astype(slab_dt),
                            target.reshape(1, n).astype(slab_dt)], axis=0)
    bins_col = bins.reshape(b, 1)

    # Lane tile: multiple of 128, default capped at 32768 (fits v5e's 16 MiB
    # scoped-VMEM default). No row padding: cdiv grid + in-kernel mask.
    lanes = -(-n // 128) * 128
    tile = max(128, (min(int(tile_n), lanes) // 128) * 128)
    num_tiles = -(-n // tile)
    if num_tiles < 2 and n > 256:
        # v7x has 2 TensorCores: keep >= 2 parallel tiles so both stay busy.
        half = -(-n // 2)
        tile = -(-half // 128) * 128
        num_tiles = -(-n // tile)

    sub_pad = -(-(b + 1) // 8) * 8
    slab_block_bytes = sub_pad * tile * jnp.dtype(slab_dt).itemsize
    vmem_bytes = int(min(64 << 20, max(16 << 20, 4 * slab_block_bytes)))

    kernel = functools.partial(
        _dfl2_kernel, n_rows=n, num_bins=b,
        ent_scale=float(entropy_weights) / b,
        uniform=uniform, bin0=bin0, inv_step=inv_step)

    parts = pl.pallas_call(
        kernel,
        out_shape=jax.ShapeDtypeStruct((num_tiles, 8, 128), jnp.float32),
        grid=(num_tiles,),
        in_specs=[
            pl.BlockSpec((b, 1), lambda i: (0, 0)),          # bins (tiny, resident)
            pl.BlockSpec((b + 1, tile), lambda i: (0, i)),   # [pred^T ; target] tile
        ],
        out_specs=pl.BlockSpec((1, 8, 128), lambda i: (i, 0, 0)),
        compiler_params=pltpu.CompilerParams(
            dimension_semantics=("parallel",),
            vmem_limit_bytes=vmem_bytes),
    )(bins_col, slab)

    # total = sum_n CE_n + (ew/B) * sum_{n,b} p*log(p) ;  loss = lw * total / N
    return jnp.float32(loss_weight) * jnp.sum(parts) / n


def distribution_focal_loss_mod2(pred, target, bins, *,
                                 target_scale=None,   # accepted, unused (as in torch)
                                 entropy_weights=1e-5,
                                 loss_weight=1.0,
                                 tile_n=32768):
    """Forward of DistributionFocalLossMod2 with default reduction='mean'.

    TODO(synk): `weight`, `avg_factor` and `reduction_override` paths of the
    torch module are not implemented (defaults only).
    """
    del target_scale
    # Host-side uniform-bins detection (normal DFL: bins = arange(B)) enables
    # the cheap in-kernel label fast path. Falls back to the generic argmin
    # when bins are traced or non-uniform.
    uniform, bin0, inv_step = False, 0.0, 1.0
    try:
        b_host = np.asarray(bins, dtype=np.float64)
        if b_host.ndim == 1 and b_host.size >= 2:
            d = np.diff(b_host)
            if d[0] > 0 and np.allclose(d, d[0], rtol=1e-6, atol=1e-9):
                uniform, bin0, inv_step = True, float(b_host[0]), float(1.0 / d[0])
        elif b_host.ndim == 1 and b_host.size == 1:
            uniform, bin0, inv_step = True, float(b_host[0]), 1.0
    except Exception:
        pass   # bins is a tracer -> generic path

    return _dfl2_impl(pred, target, bins,
                      entropy_weights=float(entropy_weights),
                      loss_weight=float(loss_weight),
                      tile_n=int(tile_n),
                      uniform=uniform, bin0=bin0, inv_step=inv_step)


def _reference_loss(pred, target, bins, entropy_weights, loss_weight):
    pred = pred.astype(jnp.float32)
    dis = jnp.abs(bins[None, :].astype(jnp.float32)
                  - target[:, None].astype(jnp.float32))
    label = jnp.argmin(dis, axis=-1)
    logsm = jax.nn.log_softmax(pred, axis=-1)
    ce_rows = -jnp.take_along_axis(logsm, label[:, None], axis=-1)[:, 0]
    ce_mean = jnp.mean(ce_rows)      # legacy reduce='none' quirk -> scalar mean
    p = jnp.clip(jax.nn.softmax(pred, axis=-1), _EPS, 1.0 - _EPS)
    loss_el = ce_mean + entropy_weights * p * jnp.log(p)
    return loss_weight * jnp.mean(loss_el)


if __name__ == "__main__":
    key = jax.random.PRNGKey(0)
    k1, k2 = jax.random.split(key)

    N, B = 600, 16          # N not a multiple of 128 -> exercises ragged block + mask
    pred = jax.random.normal(k1, (N, B), dtype=jnp.float32)
    target = jax.random.uniform(k2, (N,), dtype=jnp.float32) * (B - 1)
    target_scale = 1.0      # accepted but unused by the mod2 loss

    # 1) uniform bins -> fast label path (also forces a 2-step parallel grid).
    bins_u = jnp.arange(B, dtype=jnp.float32)
    loss_u = distribution_focal_loss_mod2(
        pred, target, bins_u, target_scale=target_scale,
        entropy_weights=1e-5, loss_weight=1.0)
    loss_u = jax.block_until_ready(loss_u)
    ref_u = _reference_loss(pred, target, bins_u, 1e-5, 1.0)
    assert jnp.allclose(loss_u, ref_u, rtol=1e-4, atol=1e-5), (loss_u, ref_u)

    # 2) non-uniform bins -> generic in-kernel argmin path.
    bins_nu = jnp.array([0.0, 0.5, 1.5, 3.0, 4.0, 5.5, 6.0, 7.0,
                         8.5, 9.0, 10.0, 11.5, 12.0, 13.0, 14.0, 15.0],
                        dtype=jnp.float32)
    loss_nu = distribution_focal_loss_mod2(
        pred, target, bins_nu, target_scale=target_scale,
        entropy_weights=1e-5, loss_weight=1.0)
    loss_nu = jax.block_until_ready(loss_nu)
    ref_nu = _reference_loss(pred, target, bins_nu, 1e-5, 1.0)
    assert jnp.allclose(loss_nu, ref_nu, rtol=1e-4, atol=1e-5), (loss_nu, ref_nu)

    print("KERNEL_OK")
</pallas_src>

<mosaic_0001>
module attributes {stable_mosaic.version = 11 : i64} {
  func.func @_dfl2_kernel(%arg0: i32, %arg1: memref<16x1xf32, #tpu.memory_space<vmem>>, %arg2: memref<17x384xf32, #tpu.memory_space<vmem>>, %arg3: memref<1x8x128xf32, #tpu.memory_space<vmem>>) attributes {dimension_semantics = [#tpu.dimension_semantics<parallel>], iteration_bounds = array<i64: 2>, scalar_prefetch = 0 : i64, scratch_operands = 0 : i64, tpu.core_type = #tpu.core_type<tc>, window_params = [{pipeline_mode = #tpu.pipeline_mode<synchronous>, transform_indices = @transform_0, window_bounds = array<i64: 16, 1>}, {transform_indices = @transform_1, window_bounds = array<i64: 17, 384>}, {transform_indices = @transform_2, window_bounds = array<i64: 1, 8, 128>}]} {
    %c0 = arith.constant 0 : index
    %c0_0 = arith.constant 0 : index
    %0 = vector.load %arg2[%c0, %c0_0] : memref<17x384xf32, #tpu.memory_space<vmem>>, vector<16x384xf32>
    %c16 = arith.constant 16 : index
    %c0_1 = arith.constant 0 : index
    %1 = vector.load %arg2[%c16, %c0_1] : memref<17x384xf32, #tpu.memory_space<vmem>>, vector<1x384xf32>
    %c384_i32 = arith.constant 384 : i32
    %2 = arith.muli %arg0, %c384_i32 : i32
    %3 = tpu.iota {dimensions = array<i32: 1>} : vector<1x384xi32>
    %4 = vector.broadcast %2 : i32 to vector<1x384xi32>
    %5 = arith.addi %4, %3 : vector<1x384xi32>
    %c600_i32 = arith.constant 600 : i32
    %6 = vector.broadcast %c600_i32 : i32 to vector<1x384xi32>
    %7 = arith.cmpi slt, %5, %6 : vector<1x384xi32>
    %8 = tpu.iota {dimensions = array<i32: 0>} : vector<16x384xi32>
    %cst = arith.constant 0.000000e+00 : f32
    %9 = vector.broadcast %cst : f32 to vector<1x384xf32>
    %10 = arith.subf %1, %9 : vector<1x384xf32>
    %cst_2 = arith.constant 1.000000e+00 : f32
    %11 = vector.broadcast %cst_2 : f32 to vector<1x384xf32>
    %12 = arith.mulf %10, %11 : vector<1x384xf32>
    %cst_3 = arith.constant 5.000000e-01 : f32
    %13 = vector.broadcast %cst_3 : f32 to vector<1x384xf32>
    %14 = arith.subf %12, %13 : vector<1x384xf32>
    %15 = math.ceil %14 : vector<1x384xf32>
    %cst_4 = arith.constant 0.000000e+00 : f32
    %cst_5 = arith.constant 1.500000e+01 : f32
    %16 = vector.broadcast %cst_4 : f32 to vector<1x384xf32>
    %17 = arith.maximumf %16, %15 : vector<1x384xf32>
    %18 = vector.broadcast %cst_5 : f32 to vector<1x384xf32>
    %19 = arith.minimumf %18, %17 : vector<1x384xf32>
    %20 = arith.fptosi %19 : vector<1x384xf32> to vector<1x384xi32>
    %21 = vector.broadcast %20 : vector<1x384xi32> to vector<16x384xi32>
    %22 = arith.cmpi eq, %8, %21 : vector<16x384xi32>
    %cst_6 = arith.constant dense<0xFF800000> : vector<384xf32>
    %23 = vector.multi_reduction <maximumf>, %0, %cst_6 [0] : vector<16x384xf32> to vector<384xf32>
    %24 = vector.shape_cast %23 : vector<384xf32> to vector<1x384xf32>
    %25 = vector.broadcast %24 : vector<1x384xf32> to vector<16x384xf32>
    %26 = arith.subf %0, %25 : vector<16x384xf32>
    %27 = math.exp %26 : vector<16x384xf32>
    %cst_7 = arith.constant dense<0.000000e+00> : vector<384xf32>
    %28 = vector.multi_reduction <add>, %27, %cst_7 [0] : vector<16x384xf32> to vector<384xf32>
    %29 = vector.shape_cast %28 : vector<384xf32> to vector<1x384xf32>
    %30 = math.log %29 : vector<1x384xf32>
    %31 = vector.broadcast %30 : vector<1x384xf32> to vector<16x384xf32>
    %32 = arith.subf %26, %31 : vector<16x384xf32>
    %33 = tpu.reciprocal %29 {approx = true} : vector<1x384xf32> -> vector<1x384xf32>
    %34 = vector.broadcast %33 : vector<1x384xf32> to vector<16x384xf32>
    %35 = arith.mulf %27, %34 : vector<16x384xf32>
    %cst_8 = arith.constant -15.9423847 : f32
    %36 = vector.broadcast %cst_8 : f32 to vector<16x384xf32>
    %37 = arith.cmpf olt, %32, %36 : vector<16x384xf32>
    %cst_9 = arith.constant -1.19209304E-7 : f32
    %38 = vector.broadcast %cst_9 : f32 to vector<16x384xf32>
    %39 = arith.cmpf ogt, %32, %38 : vector<16x384xf32>
    %40 = arith.mulf %35, %32 : vector<16x384xf32>
    %cst_10 = arith.constant -1.19209282E-7 : f32
    %41 = vector.broadcast %cst_10 : f32 to vector<16x384xf32>
    %42 = arith.select %39, %41, %40 : vector<16x384xi1>, vector<16x384xf32>
    %cst_11 = arith.constant -1.90048036E-6 : f32
    %43 = vector.broadcast %cst_11 : f32 to vector<16x384xf32>
    %44 = arith.select %37, %43, %42 : vector<16x384xi1>, vector<16x384xf32>
    %cst_12 = arith.constant 6.250000e-07 : f32
    %45 = vector.broadcast %cst_12 : f32 to vector<16x384xf32>
    %46 = arith.mulf %45, %44 : vector<16x384xf32>
    %cst_13 = arith.constant 0.000000e+00 : f32
    %47 = vector.broadcast %cst_13 : f32 to vector<16x384xf32>
    %48 = arith.select %22, %32, %47 : vector<16x384xi1>, vector<16x384xf32>
    %49 = arith.subf %46, %48 : vector<16x384xf32>
    %cst_14 = arith.constant dense<0.000000e+00> : vector<384xf32>
    %50 = vector.multi_reduction <add>, %49, %cst_14 [0] : vector<16x384xf32> to vector<384xf32>
    %51 = vector.shape_cast %50 : vector<384xf32> to vector<1x384xf32>
    %cst_15 = arith.constant 0.000000e+00 : f32
    %52 = vector.broadcast %cst_15 : f32 to vector<1x384xf32>
    %53 = arith.select %7, %51, %52 : vector<1x384xi1>, vector<1x384xf32>
    %54 = vector.extract_strided_slice %53 {offsets = [0, 0], sizes = [1, 128], strides = [1, 1]} : vector<1x384xf32> to vector<1x128xf32>
    %55 = vector.extract_strided_slice %53 {offsets = [0, 128], sizes = [1, 128], strides = [1, 1]} : vector<1x384xf32> to vector<1x128xf32>
    %56 = vector.extract_strided_slice %53 {offsets = [0, 256], sizes = [1, 128], strides = [1, 1]} : vector<1x384xf32> to vector<1x128xf32>
    %57 = arith.addf %54, %55 : vector<1x128xf32>
    %58 = arith.addf %57, %56 : vector<1x128xf32>
    %59 = tpu.iota {dimensions = array<i32: 0>} : vector<8x128xi32>
    %c0_i32 = arith.constant 0 : i32
    %60 = vector.broadcast %c0_i32 : i32 to vector<8x128xi32>
    %61 = arith.cmpi eq, %59, %60 : vector<8x128xi32>
    %62 = vector.shape_cast %58 : vector<1x128xf32> to vector<1x128xf32>
    %63 = vector.broadcast %62 : vector<1x128xf32> to vector<8x128xf32>
    %cst_16 = arith.constant 0.000000e+00 : f32
    %64 = vector.broadcast %cst_16 : f32 to vector<8x128xf32>
    %65 = arith.select %61, %63, %64 : vector<8x128xi1>, vector<8x128xf32>
    %66 = vector.shape_cast %65 : vector<8x128xf32> to vector<1x8x128xf32>
    %c0_17 = arith.constant 0 : index
    %c0_18 = arith.constant 0 : index
    %c0_19 = arith.constant 0 : index
    %67 = vector.load %arg3[%c0_17, %c0_18, %c0_19] : memref<1x8x128xf32, #tpu.memory_space<vmem>>, vector<1x8x128xf32>
    tpu.vector_store %arg3[%c0_17, %c0_18, %c0_19], %66 {strides = array<i32>} : memref<1x8x128xf32, #tpu.memory_space<vmem>>, vector<1x8x128xf32>,
    return
  }
  func.func @transform_0(%arg0: i32) -> (i32, i32) {
    %c0_i32 = arith.constant 0 : i32
    %c0_i32_0 = arith.constant 0 : i32
    %c0_i32_1 = arith.constant 0 : i32
    return %c0_i32, %c0_i32_0 : i32, i32
  }
  func.func @transform_1(%arg0: i32) -> (i32, i32) {
    %c0_i32 = arith.constant 0 : i32
    %c0_i32_0 = arith.constant 0 : i32
    return %c0_i32, %arg0 : i32, i32
  }
  func.func @transform_2(%arg0: i32) -> (i32, i32, i32) {
    %c0_i32 = arith.constant 0 : i32
    %c0_i32_0 = arith.constant 0 : i32
    %c0_i32_1 = arith.constant 0 : i32
    return %arg0, %c0_i32, %c0_i32_0 : i32, i32, i32
  }
}

</mosaic_0001>

<llo_original>
// kernel: _dfl2_impl.1
$region0: #{_dfl2_impl.1}
  #allocation0 [shape = 'u32[]', space=smem, size = 0x4, offset = 0x4, fixed_abs, tag = 'smem constant byte address 0x4 - core index']
  #allocation1 [shape = 'u32[144,128]{1,0:T(1,128)}', space=vmem, size = 0x12000, scoped, tag = 'internal scratch']
  %s0 = inlined_call_operand.vmem [shape: f32[16,1], index: 0, kind: input, shape index: {}]
  %s1 = inlined_call_operand.vmem [shape: f32[17,600], index: 1, kind: input, shape index: {}]
  %s2 = inlined_call_operand.vmem [shape: f32[2,8,128], index: 2, kind: output, shape index: {}]
  %s3 = sld [smem:[#allocation0]]
  $region107: #{_dfl2_impl.1} parent=0
    _
  %s5 = ssub.s32 1, %s3
  %s6 = scalar_select 0, %s5, %s3
  $region1: #{_dfl2_impl.1} parent=0
    #allocation2 [shape = 'u8[73728]{0}', space=vmem, size = 0x12000, scoped, tag = 'input window, operand 1']
    loop: start=0, step=1, limit=4
    $region2: #{_dfl2_impl.1} parent=1 // loop_pre_header
      _
    $region3: #{_dfl2_impl.1} parent=1 // loop_header
      %s8 = sphi 0, %s12
      %p9 = scmp.ge.s32.totalorder %s8, 4
      %s16 = sphi 0, %s16
      %s18 = sphi 0, %s16
      %s19 = sphi 0, %s18
      %s33 = sphi 0, %s19
      %s39 = sphi 0, %s41
      %s42 = sphi 0, %s39
      %s43 = sphi 0, %s42
      %s59 = sphi 0, %s43
      %s65 = sphi 0, %s67
      %s68 = sphi 0, %s65
      %s69 = sphi 0, %s68
      %s85 = sphi 0, %s69
    $region4: #{_dfl2_impl.1} parent=1 // loop_header_branch
      %11 = sbr.rel (%p9) target = $region8
    $region5: #{_dfl2_impl.1} parent=1 // loop_body
      %s13 = ssub.s32 %s8, 1
      %s14 = ssub.s32 %s8, 2
      %s15 = sadd.s32 %s8, 1
      %s17 = sadd.s32 %s16, 1
      %p20 = scmp.eq.s32.totalorder %s8, 1
      %p21 = scmp.ne.s32.totalorder %s16, %s18
      %p22 = scmp.eq.s32.totalorder %s8, 0
      %p23 = por %p21, %p22
      %p24 = scmp.ne.s32.totalorder %s16, %s18
      %p25 = scmp.eq.s32.totalorder %s13, 1
      %p26 = por %p24, %p25
      %p27 = scmp.ne.s32.totalorder %s18, %s19
      %p28 = scmp.eq.s32.totalorder %s13, 0
      %p29 = por %p27, %p28
      %p30 = scmp.ne.s32.totalorder %s18, %s19
      %p31 = scmp.eq.s32.totalorder %s14, 1
      %p32 = por %p30, %p31
      %p34 = scmp.ne.s32.totalorder %s19, %s33
      %p35 = scmp.eq.s32.totalorder %s14, 0
      %p36 = por %p34, %p35
      %s37 = ssub.s32 %s8, %s15
      %p38 = scmp.eq.s32.totalorder %s37, 0
      %s40 = sadd.s32 %s39, 1
      %s41 = scalar_select %p38, %s39, %s40
      %p44 = pneg %p38
      %p45 = scmp.eq.s32.totalorder %s8, 1
      %p46 = por %p44, %p45
      %p47 = scmp.ne.s32.totalorder %s39, %s42
      %p48 = scmp.eq.s32.totalorder %s8, 0
      %p49 = por %p47, %p48
      %p50 = scmp.ne.s32.totalorder %s39, %s42
      %p51 = scmp.eq.s32.totalorder %s13, 1
      %p52 = por %p50, %p51
      %p53 = scmp.ne.s32.totalorder %s42, %s43
      %p54 = scmp.eq.s32.totalorder %s13, 0
      %p55 = por %p53, %p54
      %p56 = scmp.ne.s32.totalorder %s42, %s43
      %p57 = scmp.eq.s32.totalorder %s14, 1
      %p58 = por %p56, %p57
      %p60 = scmp.ne.s32.totalorder %s43, %s59
      %p61 = scmp.eq.s32.totalorder %s14, 0
      %p62 = por %p60, %p61
      %s63 = ssub.s32 %s8, %s15
      %p64 = scmp.eq.s32.totalorder %s63, 0
      %s66 = sadd.s32 %s65, 1
      %s67 = scalar_select %p64, %s65, %s66
      %p70 = pneg %p64
      %p71 = scmp.eq.s32.totalorder %s8, 1
      %p72 = por %p70, %p71
      %p73 = scmp.ne.s32.totalorder %s65, %s68
      %p74 = scmp.eq.s32.totalorder %s8, 0
      %p75 = por %p73, %p74
      %p76 = scmp.ne.s32.totalorder %s65, %s68
      %p77 = scmp.eq.s32.totalorder %s13, 1
      %p78 = por %p76, %p77
      %p79 = scmp.ne.s32.totalorder %s68, %s69
      %p80 = scmp.eq.s32.totalorder %s13, 0
      %p81 = por %p79, %p80
      %p82 = scmp.ne.s32.totalorder %s68, %s69
      %p83 = scmp.eq.s32.totalorder %s14, 1
      %p84 = por %p82, %p83
      %p86 = scmp.ne.s32.totalorder %s69, %s85
      %p87 = scmp.eq.s32.totalorder %s14, 0
      %p88 = por %p86, %p87
      %p89 = scmp.le.s32.totalorder 1, %s8
      %p90 = scmp.lt.s32.totalorder %s8, 3
      %p91 = pnand %p89, %p90
      %p92 = pneg %p91
      // Predicated region
      $region9: #{_dfl2_impl.1} parent=5 // pred_check
        _
      $region10: #{_dfl2_impl.1} parent=5 // pred_check_branch
        %94 = sbr.rel (%p91) target = $region12
      $region11: #{_dfl2_impl.1} parent=5 // pred_region
        %s95 = ssub.s32 %s8, 1
        // Predicated region
        $region13: #{_dfl2_impl.1} parent=11 // pred_check
          %p96 = pneg %p29
        $region14: #{_dfl2_impl.1} parent=11 // pred_check_branch
          %98 = sbr.rel (%p96) target = $region16
        $region15: #{_dfl2_impl.1} parent=11 // pred_region
          _
        $region16: #{_dfl2_impl.1} parent=11 // pred_fallthru
          _
      $region12: #{_dfl2_impl.1} parent=5 // pred_fallthru
        _
      %p99 = scmp.lt.s32.totalorder %s8, 2
      // Predicated region
      $region17: #{_dfl2_impl.1} parent=5 // pred_check
        %p100 = pneg %p99
      $region18: #{_dfl2_impl.1} parent=5 // pred_check_branch
        %102 = sbr.rel (%p100) target = $region20
      $region19: #{_dfl2_impl.1} parent=5 // pred_region
        // Predicated region
        $region21: #{_dfl2_impl.1} parent=19 // pred_check
          %p103 = pneg %p49
        $region22: #{_dfl2_impl.1} parent=19 // pred_check_branch
          %105 = sbr.rel (%p103) target = $region24
        $region23: #{_dfl2_impl.1} parent=19 // pred_region
          %s106 = sand.u32 %s39, 1
          %s107 = sand.u32 %s39, 1
          %s108 = smul.addr %s107, 72
          %s109 = scalar_lea.vmem [#allocation2], %s108
          %s110 = smul.u32 3, %s8
          %s111 = ssub.s32 5, %s110
          %p112 = scmp.lt.s32.totalorder %s111, 3
          %s113 = scalar_select %p112, %s111, 3
          %s114 = smul.u32 384, %s113
          %p115 = scmp.ne.s32.totalorder 0, %s114
          %s116 = smul.addr %s110, 8
          %s117 = scalar_lea.vmem %s1, %s116
          %s118 = smul.u32 %s113, 8
          // Predicated region
          $region25: #{_dfl2_impl.1} parent=23 // pred_check
            %p119 = pneg %p115
          $region26: #{_dfl2_impl.1} parent=23 // pred_check_branch
            %121 = sbr.rel (%p119) target = $region28
          $region27: #{_dfl2_impl.1} parent=23 // pred_region
            %p122 = scmp.lt.u32.totalorder %s118, 8
            %p123 = pneg %p122
            // Predicated region
            $region29: #{_dfl2_impl.1} parent=27 // pred_check
              _
            $region30: #{_dfl2_impl.1} parent=27 // pred_check_branch
              %125 = sbr.rel (%p122) target = $region32
            $region31: #{_dfl2_impl.1} parent=27 // pred_region
              %s144 = sand.u32 %s118, 7
              %p145 = scmp.eq.s32.totalorder %s144, 0
              // Predicated region
              $region44: #{_dfl2_impl.1} parent=31 // pred_check
                %p146 = pneg %p145
              $region45: #{_dfl2_impl.1} parent=31 // pred_check_branch
                %148 = sbr.rel (%p146) target = $region47
              $region46: #{_dfl2_impl.1} parent=31 // pred_region
                %s149 = sshrl.u32 %s118, 3
                %s150 = sdiv.u32.pop %s149, 24
                %s151 = srem.u32.pop %s149, 24
                // While loop
                $region48: #{_dfl2_impl.1} parent=46 // loop_pre_header
                  _
                $region49: #{_dfl2_impl.1} parent=46 // loop_header
                  %s155 = sphi 0, %s157
                  %p156 = scmp.ge.s32.totalorder %s155, %s150
                  %s160 = sphi 0, %s309
                  %s161 = sphi %s117, %s312
                  %s162 = sphi %s109, %s313
                $region50: #{_dfl2_impl.1} parent=46 // loop_header_branch
                  %159 = sbr.rel (%p156) target = $region54
                $region51: #{_dfl2_impl.1} parent=46 // loop_body
                  %v163 = vld [vmem:[%s161] sm:$0xff]
                  %164 = vst [vmem:[%s162] sm:$0xff] %v163
                  %v165 = vld [vmem:[%s161 + $0x8] sm:$0xff]
                  %166 = vst [vmem:[%s162 + $0x8] sm:$0xff] %v165
                  %v167 = vld [vmem:[%s161 + $0x10] sm:$0xff]
                  %168 = vst [vmem:[%s162 + $0x10] sm:$0xff] %v167
                  %v169 = vld [vmem:[%s161 + $0x18] sm:$0xff]
                  %170 = vst [vmem:[%s162 + $0x18] sm:$0xff] %v169
                  %v171 = vld [vmem:[%s161 + $0x20] sm:$0xff]
                  %172 = vst [vmem:[%s162 + $0x20] sm:$0xff] %v171
                  %v173 = vld [vmem:[%s161 + $0x28] sm:$0xff]
                  %174 = vst [vmem:[%s162 + $0x28] sm:$0xff] %v173
                  %v175 = vld [vmem:[%s161 + $0x30] sm:$0xff]
                  %176 = vst [vmem:[%s162 + $0x30] sm:$0xff] %v175
                  %v177 = vld [vmem:[%s161 + $0x38] sm:$0xff]
                  %178 = vst [vmem:[%s162 + $0x38] sm:$0xff] %v177
                  %v179 = vld [vmem:[%s161 + $0x40] sm:$0xff]
                  %180 = vst [vmem:[%s162 + $0x40] sm:$0xff] %v179
                  %v181 = vld [vmem:[%s161 + $0x48] sm:$0xff]
                  %182 = vst [vmem:[%s162 + $0x48] sm:$0xff] %v181
                  %v183 = vld [vmem:[%s161 + $0x50] sm:$0xff]
                  %184 = vst [vmem:[%s162 + $0x50] sm:$0xff] %v183
                  %v185 = vld [vmem:[%s161 + $0x58] sm:$0xff]
                  %186 = vst [vmem:[%s162 + $0x58] sm:$0xff] %v185
                  %v187 = vld [vmem:[%s161 + $0x60] sm:$0xff]
                  %188 = vst [vmem:[%s162 + $0x60] sm:$0xff] %v187
                  %v189 = vld [vmem:[%s161 + $0x68] sm:$0xff]
                  %190 = vst [vmem:[%s162 + $0x68] sm:$0xff] %v189
                  %v191 = vld [vmem:[%s161 + $0x70] sm:$0xff]
                  %192 = vst [vmem:[%s162 + $0x70] sm:$0xff] %v191
                  %v193 = vld [vmem:[%s161 + $0x78] sm:$0xff]
                  %194 = vst [vmem:[%s162 + $0x78] sm:$0xff] %v193
                  %v195 = vld [vmem:[%s161 + $0x80] sm:$0xff]
                  %196 = vst [vmem:[%s162 + $0x80] sm:$0xff] %v195
                  %v197 = vld [vmem:[%s161 + $0x88] sm:$0xff]
                  %198 = vst [vmem:[%s162 + $0x88] sm:$0xff] %v197
                  %v199 = vld [vmem:[%s161 + $0x90] sm:$0xff]
                  %200 = vst [vmem:[%s162 + $0x90] sm:$0xff] %v199
                  %v201 = vld [vmem:[%s161 + $0x98] sm:$0xff]
                  %202 = vst [vmem:[%s162 + $0x98] sm:$0xff] %v201
                  %v203 = vld [vmem:[%s161 + $0xa0] sm:$0xff]
                  %204 = vst [vmem:[%s162 + $0xa0] sm:$0xff] %v203
                  %v205 = vld [vmem:[%s161 + $0xa8] sm:$0xff]
                  %206 = vst [vmem:[%s162 + $0xa8] sm:$0xff] %v205
                  %v207 = vld [vmem:[%s161 + $0xb0] sm:$0xff]
                  %208 = vst [vmem:[%s162 + $0xb0] sm:$0xff] %v207
                  %v209 = vld [vmem:[%s161 + $0xb8] sm:$0xff]
                  %210 = vst [vmem:[%s162 + $0xb8] sm:$0xff] %v209
                  %v211 = vld [vmem:[%s161 + $0x28] sm:$0xff]
                  %212 = vst [vmem:[%s162 + $0x18] sm:$0xff] %v211
                  %v213 = vld [vmem:[%s161 + $0x30] sm:$0xff]
                  %214 = vst [vmem:[%s162 + $0x20] sm:$0xff] %v213
                  %v215 = vld [vmem:[%s161 + $0x38] sm:$0xff]
                  %216 = vst [vmem:[%s162 + $0x28] sm:$0xff] %v215
                  %v217 = vld [vmem:[%s161 + $0x40] sm:$0xff]
                  %218 = vst [vmem:[%s162 + $0x30] sm:$0xff] %v217
                  %v219 = vld [vmem:[%s161 + $0x48] sm:$0xff]
                  %220 = vst [vmem:[%s162 + $0x38] sm:$0xff] %v219
                  %v221 = vld [vmem:[%s161 + $0x50] sm:$0xff]
                  %222 = vst [vmem:[%s162 + $0x40] sm:$0xff] %v221
                  %v223 = vld [vmem:[%s161 + $0x58] sm:$0xff]
                  %224 = vst [vmem:[%s162 + $0x48] sm:$0xff] %v223
                  %v225 = vld [vmem:[%s161 + $0x60] sm:$0xff]
                  %226 = vst [vmem:[%s162 + $0x50] sm:$0xff] %v225
                  %v227 = vld [vmem:[%s161 + $0x68] sm:$0xff]
                  %228 = vst [vmem:[%s162 + $0x58] sm:$0xff] %v227
                  %v229 = vld [vmem:[%s161 + $0x70] sm:$0xff]
                  %230 = vst [vmem:[%s162 + $0x60] sm:$0xff] %v229
                  %v231 = vld [vmem:[%s161 + $0x78] sm:$0xff]
                  %232 = vst [vmem:[%s162 + $0x68] sm:$0xff] %v231
                  %v233 = vld [vmem:[%s161 + $0x80] sm:$0xff]
                  %234 = vst [vmem:[%s162 + $0x70] sm:$0xff] %v233
                  %v235 = vld [vmem:[%s161 + $0x88] sm:$0xff]
                  %236 = vst [vmem:[%s162 + $0x78] sm:$0xff] %v235
                  %v237 = vld [vmem:[%s161 + $0x90] sm:$0xff]
                  %238 = vst [vmem:[%s162 + $0x80] sm:$0xff] %v237
                  %v239 = vld [vmem:[%s161 + $0x98] sm:$0xff]
                  %240 = vst [vmem:[%s162 + $0x88] sm:$0xff] %v239
                  %v241 = vld [vmem:[%s161 + $0xa0] sm:$0xff]
                  %242 = vst [vmem:[%s162 + $0x90] sm:$0xff] %v241
                  %v243 = vld [vmem:[%s161 + $0xa8] sm:$0xff]
                  %244 = vst [vmem:[%s162 + $0x98] sm:$0xff] %v243
                  %v245 = vld [vmem:[%s161 + $0xb0] sm:$0xff]
                  %246 = vst [vmem:[%s162 + $0xa0] sm:$0xff] %v245
                  %v247 = vld [vmem:[%s161 + $0xb8] sm:$0xff]
                  %248 = vst [vmem:[%s162 + $0xa8] sm:$0xff] %v247
                  %v249 = vld [vmem:[%s161 + $0xc0] sm:$0xff]
                  %250 = vst [vmem:[%s162 + $0xb0] sm:$0xff] %v249
                  %v251 = vld [vmem:[%s161 + $0xc8] sm:$0xff]
                  %252 = vst [vmem:[%s162 + $0xb8] sm:$0xff] %v251
                  %v253 = vld [vmem:[%s161 + $0xd0] sm:$0xff]
                  %254 = vst [vmem:[%s162 + $0xc0] sm:$0xff] %v253
                  %v255 = vld [vmem:[%s161 + $0xd8] sm:$0xff]
                  %256 = vst [vmem:[%s162 + $0xc8] sm:$0xff] %v255
                  %v257 = vld [vmem:[%s161 + $0xe0] sm:$0xff]
                  %258 = vst [vmem:[%s162 + $0xd0] sm:$0xff] %v257
                  %v259 = vld [vmem:[%s161 + $0x50] sm:$0xff]
                  %260 = vst [vmem:[%s162 + $0x30] sm:$0xff] %v259
                  %v261 = vld [vmem:[%s161 + $0x58] sm:$0xff]
                  %262 = vst [vmem:[%s162 + $0x38] sm:$0xff] %v261
                  %v263 = vld [vmem:[%s161 + $0x60] sm:$0xff]
                  %264 = vst [vmem:[%s162 + $0x40] sm:$0xff] %v263
                  %v265 = vld [vmem:[%s161 + $0x68] sm:$0xff]
                  %266 = vst [vmem:[%s162 + $0x48] sm:$0xff] %v265
                  %v267 = vld [vmem:[%s161 + $0x70] sm:$0xff]
                  %268 = vst [vmem:[%s162 + $0x50] sm:$0xff] %v267
                  %v269 = vld [vmem:[%s161 + $0x78] sm:$0xff]
                  %270 = vst [vmem:[%s162 + $0x58] sm:$0xff] %v269
                  %v271 = vld [vmem:[%s161 + $0x80] sm:$0xff]
                  %272 = vst [vmem:[%s162 + $0x60] sm:$0xff] %v271
                  %v273 = vld [vmem:[%s161 + $0x88] sm:$0xff]
                  %274 = vst [vmem:[%s162 + $0x68] sm:$0xff] %v273
                  %v275 = vld [vmem:[%s161 + $0x90] sm:$0xff]
                  %276 = vst [vmem:[%s162 + $0x70] sm:$0xff] %v275
                  %v277 = vld [vmem:[%s161 + $0x98] sm:$0xff]
                  %278 = vst [vmem:[%s162 + $0x78] sm:$0xff] %v277
                  %v279 = vld [vmem:[%s161 + $0xa0] sm:$0xff]
                  %280 = vst [vmem:[%s162 + $0x80] sm:$0xff] %v279
                  %v281 = vld [vmem:[%s161 + $0xa8] sm:$0xff]
                  %282 = vst [vmem:[%s162 + $0x88] sm:$0xff] %v281
                  %v283 = vld [vmem:[%s161 + $0xb0] sm:$0xff]
                  %284 = vst [vmem:[%s162 + $0x90] sm:$0xff] %v283
                  %v285 = vld [vmem:[%s161 + $0xb8] sm:$0xff]
                  %286 = vst [vmem:[%s162 + $0x98] sm:$0xff] %v285
                  %v287 = vld [vmem:[%s161 + $0xc0] sm:$0xff]
                  %288 = vst [vmem:[%s162 + $0xa0] sm:$0xff] %v287
                  %v289 = vld [vmem:[%s161 + $0xc8] sm:$0xff]
                  %290 = vst [vmem:[%s162 + $0xa8] sm:$0xff] %v289
                  %v291 = vld [vmem:[%s161 + $0xd0] sm:$0xff]
                  %292 = vst [vmem:[%s162 + $0xb0] sm:$0xff] %v291
                  %v293 = vld [vmem:[%s161 + $0xd8] sm:$0xff]
                  %294 = vst [vmem:[%s162 + $0xb8] sm:$0xff] %v293
                  %v295 = vld [vmem:[%s161 + $0xe0] sm:$0xff]
                  %296 = vst [vmem:[%s162 + $0xc0] sm:$0xff] %v295
                  %v297 = vld [vmem:[%s161 + $0xe8] sm:$0xff]
                  %298 = vst [vmem:[%s162 + $0xc8] sm:$0xff] %v297
                  %v299 = vld [vmem:[%s161 + $0xf0] sm:$0xff]
                  %300 = vst [vmem:[%s162 + $0xd0] sm:$0xff] %v299
                  %v301 = vld [vmem:[%s161 + $0xf8] sm:$0xff]
                  %302 = vst [vmem:[%s162 + $0xd8] sm:$0xff] %v301
                  %v303 = vld [vmem:[%s161 + $0x100] sm:$0xff]
                  %304 = vst [vmem:[%s162 + $0xe0] sm:$0xff] %v303
                  %v305 = vld [vmem:[%s161 + $0x108] sm:$0xff]
                  %306 = vst [vmem:[%s162 + $0xe8] sm:$0xff] %v305
                  %s307 = sadd.s32 1, %s160
                  %p308 = scmp.ge.s32.totalorder %s307, %s150
                  %s309 = scalar_select %p308, 0, %s307
                  %s310 = smul.u32 %s309, 192
                  %s311 = smul.u32 %s309, 192
                  %s312 = scalar_lea.vmem %s117, %s310
                  %s313 = scalar_lea.vmem %s109, %s311 [#allocation2]
                $region52: #{_dfl2_impl.1} parent=46 // loop_footer
                  %s157 = sadd.s32 %s155, 1
                $region53: #{_dfl2_impl.1} parent=46 // loop_footer_branch
                  %154 = sbr.rel target = $region49
                $region54: #{_dfl2_impl.1} parent=46 // loop_exit
                  _
                %s314 = sdiv.u32.pop %s149, 24
                %s315 = srem.u32.pop %s149, 24
                %s316 = smul.u32 %s314, 24
                %s317 = smul.u32 128, %s316
                %s318 = sshra.s32 %s317, 4
                %s319 = scalar_lea.vmem %s117, %s318
                %s320 = smul.u32 128, %s316
                %s321 = sshra.s32 %s320, 4
                %s322 = scalar_lea.vmem %s109, %s321 [#allocation2]
                // While loop
                $region55: #{_dfl2_impl.1} parent=46 // loop_pre_header
                  _
                $region56: #{_dfl2_impl.1} parent=46 // loop_header
                  %s326 = sphi 0, %s328
                  %p327 = scmp.ge.s32.totalorder %s326, %s315
                  %s331 = sphi 0, %s342
                  %s332 = sphi %s319, %s345
                  %s333 = sphi %s322, %s346
                $region57: #{_dfl2_impl.1} parent=46 // loop_header_branch
                  %330 = sbr.rel (%p327) target = $region61
                $region58: #{_dfl2_impl.1} parent=46 // loop_body
                  %v334 = vld [vmem:[%s332] sm:$0xff]
                  %335 = vst [vmem:[%s333] sm:$0xff] %v334
                  %v336 = vld [vmem:[%s332 + $0x28] sm:$0xff]
                  %337 = vst [vmem:[%s333 + $0x18] sm:$0xff] %v336
                  %v338 = vld [vmem:[%s332 + $0x50] sm:$0xff]
                  %339 = vst [vmem:[%s333 + $0x30] sm:$0xff] %v338
                  %s340 = sadd.s32 1, %s331
                  %p341 = scmp.ge.s32.totalorder %s340, %s315
                  %s342 = scalar_select %p341, 0, %s340
                  %s343 = smul.u32 %s342, 8
                  %s344 = smul.u32 %s342, 8
                  %s345 = scalar_lea.vmem %s319, %s343
                  %s346 = scalar_lea.vmem %s322, %s344 [#allocation2]
                $region59: #{_dfl2_impl.1} parent=46 // loop_footer
                  %s328 = sadd.s32 %s326, 1
                $region60: #{_dfl2_impl.1} parent=46 // loop_footer_branch
                  %325 = sbr.rel target = $region56
                $region61: #{_dfl2_impl.1} parent=46 // loop_exit
                  _
              $region47: #{_dfl2_impl.1} parent=31 // pred_fallthru
                _
              %p347 = pneg %p145
              // Predicated region
              $region62: #{_dfl2_impl.1} parent=31 // pred_check
                _
              $region63: #{_dfl2_impl.1} parent=31 // pred_check_branch
                %349 = sbr.rel (%p145) target = $region65
              $region64: #{_dfl2_impl.1} parent=31 // pred_region
                %s350 = sand.u32 %s118, 7
                %s351 = ssub.s32 %s118, %s350
                %s352 = scalar_lea.vmem %s117, %s351
                %s353 = ssub.s32 %s118, %s350
                %s354 = scalar_lea.vmem %s109, %s353 [#allocation2]
                %s355 = sshrl.u32 %s118, 3
                %s356 = sdiv.u32.pop %s355, 24
                %s357 = srem.u32.pop %s355, 24
                // While loop
                $region66: #{_dfl2_impl.1} parent=64 // loop_pre_header
                  _
                $region67: #{_dfl2_impl.1} parent=64 // loop_header
                  %s361 = sphi 0, %s363
                  %p362 = scmp.ge.s32.totalorder %s361, %s356
                  %s366 = sphi 0, %s515
                  %s367 = sphi %s117, %s518
                  %s368 = sphi %s109, %s519
                $region68: #{_dfl2_impl.1} parent=64 // loop_header_branch
                  %365 = sbr.rel (%p362) target = $region72
                $region69: #{_dfl2_impl.1} parent=64 // loop_body
                  %v369 = vld [vmem:[%s367] sm:$0xff]
                  %370 = vst [vmem:[%s368] sm:$0xff] %v369
                  %v371 = vld [vmem:[%s367 + $0x8] sm:$0xff]
                  %372 = vst [vmem:[%s368 + $0x8] sm:$0xff] %v371
                  %v373 = vld [vmem:[%s367 + $0x10] sm:$0xff]
                  %374 = vst [vmem:[%s368 + $0x10] sm:$0xff] %v373
                  %v375 = vld [vmem:[%s367 + $0x18] sm:$0xff]
                  %376 = vst [vmem:[%s368 + $0x18] sm:$0xff] %v375
                  %v377 = vld [vmem:[%s367 + $0x20] sm:$0xff]
                  %378 = vst [vmem:[%s368 + $0x20] sm:$0xff] %v377
                  %v379 = vld [vmem:[%s367 + $0x28] sm:$0xff]
                  %380 = vst [vmem:[%s368 + $0x28] sm:$0xff] %v379
                  %v381 = vld [vmem:[%s367 + $0x30] sm:$0xff]
                  %382 = vst [vmem:[%s368 + $0x30] sm:$0xff] %v381
                  %v383 = vld [vmem:[%s367 + $0x38] sm:$0xff]
                  %384 = vst [vmem:[%s368 + $0x38] sm:$0xff] %v383
                  %v385 = vld [vmem:[%s367 + $0x40] sm:$0xff]
                  %386 = vst [vmem:[%s368 + $0x40] sm:$0xff] %v385
                  %v387 = vld [vmem:[%s367 + $0x48] sm:$0xff]
                  %388 = vst [vmem:[%s368 + $0x48] sm:$0xff] %v387
                  %v389 = vld [vmem:[%s367 + $0x50] sm:$0xff]
                  %390 = vst [vmem:[%s368 + $0x50] sm:$0xff] %v389
                  %v391 = vld [vmem:[%s367 + $0x58] sm:$0xff]
                  %392 = vst [vmem:[%s368 + $0x58] sm:$0xff] %v391
                  %v393 = vld [vmem:[%s367 + $0x60] sm:$0xff]
                  %394 = vst [vmem:[%s368 + $0x60] sm:$0xff] %v393
                  %v395 = vld [vmem:[%s367 + $0x68] sm:$0xff]
                  %396 = vst [vmem:[%s368 + $0x68] sm:$0xff] %v395
                  %v397 = vld [vmem:[%s367 + $0x70] sm:$0xff]
                  %398 = vst [vmem:[%s368 + $0x70] sm:$0xff] %v397
                  %v399 = vld [vmem:[%s367 + $0x78] sm:$0xff]
                  %400 = vst [vmem:[%s368 + $0x78] sm:$0xff] %v399
                  %v401 = vld [vmem:[%s367 + $0x80] sm:$0xff]
                  %402 = vst [vmem:[%s368 + $0x80] sm:$0xff] %v401
                  %v403 = vld [vmem:[%s367 + $0x88] sm:$0xff]
                  %404 = vst [vmem:[%s368 + $0x88] sm:$0xff] %v403
                  %v405 = vld [vmem:[%s367 + $0x90] sm:$0xff]
                  %406 = vst [vmem:[%s368 + $0x90] sm:$0xff] %v405
                  %v407 = vld [vmem:[%s367 + $0x98] sm:$0xff]
                  %408 = vst [vmem:[%s368 + $0x98] sm:$0xff] %v407
                  %v409 = vld [vmem:[%s367 + $0xa0] sm:$0xff]
                  %410 = vst [vmem:[%s368 + $0xa0] sm:$0xff] %v409
                  %v411 = vld [vmem:[%s367 + $0xa8] sm:$0xff]
                  %412 = vst [vmem:[%s368 + $0xa8] sm:$0xff] %v411
                  %v413 = vld [vmem:[%s367 + $0xb0] sm:$0xff]
                  %414 = vst [vmem:[%s368 + $0xb0] sm:$0xff] %v413
                  %v415 = vld [vmem:[%s367 + $0xb8] sm:$0xff]
                  %416 = vst [vmem:[%s368 + $0xb8] sm:$0xff] %v415
                  %v417 = vld [vmem:[%s367 + $0x28] sm:$0xff]
                  %418 = vst [vmem:[%s368 + $0x18] sm:$0xff] %v417
                  %v419 = vld [vmem:[%s367 + $0x30] sm:$0xff]
                  %420 = vst [vmem:[%s368 + $0x20] sm:$0xff] %v419
                  %v421 = vld [vmem:[%s367 + $0x38] sm:$0xff]
                  %422 = vst [vmem:[%s368 + $0x28] sm:$0xff] %v421
                  %v423 = vld [vmem:[%s367 + $0x40] sm:$0xff]
                  %424 = vst [vmem:[%s368 + $0x30] sm:$0xff] %v423
                  %v425 = vld [vmem:[%s367 + $0x48] sm:$0xff]
                  %426 = vst [vmem:[%s368 + $0x38] sm:$0xff] %v425
                  %v427 = vld [vmem:[%s367 + $0x50] sm:$0xff]
                  %428 = vst [vmem:[%s368 + $0x40] sm:$0xff] %v427
                  %v429 = vld [vmem:[%s367 + $0x58] sm:$0xff]
                  %430 = vst [vmem:[%s368 + $0x48] sm:$0xff] %v429
                  %v431 = vld [vmem:[%s367 + $0x60] sm:$0xff]
                  %432 = vst [vmem:[%s368 + $0x50] sm:$0xff] %v431
                  %v433 = vld [vmem:[%s367 + $0x68] sm:$0xff]
                  %434 = vst [vmem:[%s368 + $0x58] sm:$0xff] %v433
                  %v435 = vld [vmem:[%s367 + $0x70] sm:$0xff]
                  %436 = vst [vmem:[%s368 + $0x60] sm:$0xff] %v435
                  %v437 = vld [vmem:[%s367 + $0x78] sm:$0xff]
                  %438 = vst [vmem:[%s368 + $0x68] sm:$0xff] %v437
                  %v439 = vld [vmem:[%s367 + $0x80] sm:$0xff]
                  %440 = vst [vmem:[%s368 + $0x70] sm:$0xff] %v439
                  %v441 = vld [vmem:[%s367 + $0x88] sm:$0xff]
                  %442 = vst [vmem:[%s368 + $0x78] sm:$0xff] %v441
                  %v443 = vld [vmem:[%s367 + $0x90] sm:$0xff]
                  %444 = vst [vmem:[%s368 + $0x80] sm:$0xff] %v443
                  %v445 = vld [vmem:[%s367 + $0x98] sm:$0xff]
                  %446 = vst [vmem:[%s368 + $0x88] sm:$0xff] %v445
                  %v447 = vld [vmem:[%s367 + $0xa0] sm:$0xff]
                  %448 = vst [vmem:[%s368 + $0x90] sm:$0xff] %v447
                  %v449 = vld [vmem:[%s367 + $0xa8] sm:$0xff]
                  %450 = vst [vmem:[%s368 + $0x98] sm:$0xff] %v449
                  %v451 = vld [vmem:[%s367 + $0xb0] sm:$0xff]
                  %452 = vst [vmem:[%s368 + $0xa0] sm:$0xff] %v451
                  %v453 = vld [vmem:[%s367 + $0xb8] sm:$0xff]
                  %454 = vst [vmem:[%s368 + $0xa8] sm:$0xff] %v453
                  %v455 = vld [vmem:[%s367 + $0xc0] sm:$0xff]
                  %456 = vst [vmem:[%s368 + $0xb0] sm:$0xff] %v455
                  %v457 = vld [vmem:[%s367 + $0xc8] sm:$0xff]
                  %458 = vst [vmem:[%s368 + $0xb8] sm:$0xff] %v457
                  %v459 = vld [vmem:[%s367 + $0xd0] sm:$0xff]
                  %460 = vst [vmem:[%s368 + $0xc0] sm:$0xff] %v459
                  %v461 = vld [vmem:[%s367 + $0xd8] sm:$0xff]
                  %462 = vst [vmem:[%s368 + $0xc8] sm:$0xff] %v461
                  %v463 = vld [vmem:[%s367 + $0xe0] sm:$0xff]
                  %464 = vst [vmem:[%s368 + $0xd0] sm:$0xff] %v463
                  %v465 = vld [vmem:[%s367 + $0x50] sm:$0xff]
                  %466 = vst [vmem:[%s368 + $0x30] sm:$0xff] %v465
                  %v467 = vld [vmem:[%s367 + $0x58] sm:$0xff]
                  %468 = vst [vmem:[%s368 + $0x38] sm:$0xff] %v467
                  %v469 = vld [vmem:[%s367 + $0x60] sm:$0xff]
                  %470 = vst [vmem:[%s368 + $0x40] sm:$0xff] %v469
                  %v471 = vld [vmem:[%s367 + $0x68] sm:$0xff]
                  %472 = vst [vmem:[%s368 + $0x48] sm:$0xff] %v471
                  %v473 = vld [vmem:[%s367 + $0x70] sm:$0xff]
                  %474 = vst [vmem:[%s368 + $0x50] sm:$0xff] %v473
                  %v475 = vld [vmem:[%s367 + $0x78] sm:$0xff]
                  %476 = vst [vmem:[%s368 + $0x58] sm:$0xff] %v475
                  %v477 = vld [vmem:[%s367 + $0x80] sm:$0xff]
                  %478 = vst [vmem:[%s368 + $0x60] sm:$0xff] %v477
                  %v479 = vld [vmem:[%s367 + $0x88] sm:$0xff]
                  %480 = vst [vmem:[%s368 + $0x68] sm:$0xff] %v479
                  %v481 = vld [vmem:[%s367 + $0x90] sm:$0xff]
                  %482 = vst [vmem:[%s368 + $0x70] sm:$0xff] %v481
                  %v483 = vld [vmem:[%s367 + $0x98] sm:$0xff]
                  %484 = vst [vmem:[%s368 + $0x78] sm:$0xff] %v483
                  %v485 = vld [vmem:[%s367 + $0xa0] sm:$0xff]
                  %486 = vst [vmem:[%s368 + $0x80] sm:$0xff] %v485
                  %v487 = vld [vmem:[%s367 + $0xa8] sm:$0xff]
                  %488 = vst [vmem:[%s368 + $0x88] sm:$0xff] %v487
                  %v489 = vld [vmem:[%s367 + $0xb0] sm:$0xff]
                  %490 = vst [vmem:[%s368 + $0x90] sm:$0xff] %v489
                  %v491 = vld [vmem:[%s367 + $0xb8] sm:$0xff]
                  %492 = vst [vmem:[%s368 + $0x98] sm:$0xff] %v491
                  %v493 = vld [vmem:[%s367 + $0xc0] sm:$0xff]
                  %494 = vst [vmem:[%s368 + $0xa0] sm:$0xff] %v493
                  %v495 = vld [vmem:[%s367 + $0xc8] sm:$0xff]
                  %496 = vst [vmem:[%s368 + $0xa8] sm:$0xff] %v495
                  %v497 = vld [vmem:[%s367 + $0xd0] sm:$0xff]
                  %498 = vst [vmem:[%s368 + $0xb0] sm:$0xff] %v497
                  %v499 = vld [vmem:[%s367 + $0xd8] sm:$0xff]
                  %500 = vst [vmem:[%s368 + $0xb8] sm:$0xff] %v499
                  %v501 = vld [vmem:[%s367 + $0xe0] sm:$0xff]
                  %502 = vst [vmem:[%s368 + $0xc0] sm:$0xff] %v501
                  %v503 = vld [vmem:[%s367 + $0xe8] sm:$0xff]
                  %504 = vst [vmem:[%s368 + $0xc8] sm:$0xff] %v503
                  %v505 = vld [vmem:[%s367 + $0xf0] sm:$0xff]
                  %506 = vst [vmem:[%s368 + $0xd0] sm:$0xff] %v505
                  %v507 = vld [vmem:[%s367 + $0xf8] sm:$0xff]
                  %508 = vst [vmem:[%s368 + $0xd8] sm:$0xff] %v507
                  %v509 = vld [vmem:[%s367 + $0x100] sm:$0xff]
                  %510 = vst [vmem:[%s368 + $0xe0] sm:$0xff] %v509
                  %v511 = vld [vmem:[%s367 + $0x108] sm:$0xff]
                  %512 = vst [vmem:[%s368 + $0xe8] sm:$0xff] %v511
                  %s513 = sadd.s32 1, %s366
                  %p514 = scmp.ge.s32.totalorder %s513, %s356
                  %s515 = scalar_select %p514, 0, %s513
                  %s516 = smul.u32 %s515, 192
                  %s517 = smul.u32 %s515, 192
                  %s518 = scalar_lea.vmem %s117, %s516
                  %s519 = scalar_lea.vmem %s109, %s517 [#allocation2]
                $region70: #{_dfl2_impl.1} parent=64 // loop_footer
                  %s363 = sadd.s32 %s361, 1
                $region71: #{_dfl2_impl.1} parent=64 // loop_footer_branch
                  %360 = sbr.rel target = $region67
                $region72: #{_dfl2_impl.1} parent=64 // loop_exit
                  _
                %s520 = sdiv.u32.pop %s355, 24
                %s521 = srem.u32.pop %s355, 24
                %s522 = smul.u32 %s520, 24
                %s523 = smul.u32 128, %s522
                %s524 = sshra.s32 %s523, 4
                %s525 = scalar_lea.vmem %s117, %s524
                %s526 = smul.u32 128, %s522
                %s527 = sshra.s32 %s526, 4
                %s528 = scalar_lea.vmem %s109, %s527 [#allocation2]
                // While loop
                $region73: #{_dfl2_impl.1} parent=64 // loop_pre_header
                  _
                $region74: #{_dfl2_impl.1} parent=64 // loop_header
                  %s532 = sphi 0, %s534
                  %p533 = scmp.ge.s32.totalorder %s532, %s521
                  %s537 = sphi 0, %s548
                  %s538 = sphi %s525, %s551
                  %s539 = sphi %s528, %s552
                $region75: #{_dfl2_impl.1} parent=64 // loop_header_branch
                  %536 = sbr.rel (%p533) target = $region79
                $region76: #{_dfl2_impl.1} parent=64 // loop_body
                  %v540 = vld [vmem:[%s538] sm:$0xff]
                  %541 = vst [vmem:[%s539] sm:$0xff] %v540
                  %v542 = vld [vmem:[%s538 + $0x28] sm:$0xff]
                  %543 = vst [vmem:[%s539 + $0x18] sm:$0xff] %v542
                  %v544 = vld [vmem:[%s538 + $0x50] sm:$0xff]
                  %545 = vst [vmem:[%s539 + $0x30] sm:$0xff] %v544
                  %s546 = sadd.s32 1, %s537
                  %p547 = scmp.ge.s32.totalorder %s546, %s521
                  %s548 = scalar_select %p547, 0, %s546
                  %s549 = smul.u32 %s548, 8
                  %s550 = smul.u32 %s548, 8
                  %s551 = scalar_lea.vmem %s525, %s549
                  %s552 = scalar_lea.vmem %s528, %s550 [#allocation2]
                $region77: #{_dfl2_impl.1} parent=64 // loop_footer
                  %s534 = sadd.s32 %s532, 1
                $region78: #{_dfl2_impl.1} parent=64 // loop_footer_branch
                  %531 = sbr.rel target = $region74
                $region79: #{_dfl2_impl.1} parent=64 // loop_exit
                  _
                %s553 = sshllo.u32 0, %s350
                loop: start=0, step=1, limit=1
                $region80: #{_dfl2_impl.1} parent=64 // loop_pre_header
                  _
                $region81: #{_dfl2_impl.1} parent=64 // loop_header
                  %s555 = sphi 0, %s559
                  %p556 = scmp.ge.s32.totalorder %s555, 1
                  %s560 = sphi %s352, %s352
                  %s561 = sphi %s354, %s354
                $region82: #{_dfl2_impl.1} parent=64 // loop_header_branch
                  %558 = sbr.rel (%p556) target = $region86
                $region83: #{_dfl2_impl.1} parent=64 // loop_body
                  %v562 = vld [vmem:[%s560] sm:%s553]
                  %563 = vst [vmem:[%s561] sm:%s553] %v562
                  %v564 = vld [vmem:[%s560 + $0x28] sm:%s553]
                  %565 = vst [vmem:[%s561 + $0x18] sm:%s553] %v564
                  %v566 = vld [vmem:[%s560 + $0x50] sm:%s553]
                  %567 = vst [vmem:[%s561 + $0x30] sm:%s553] %v566
                $region84: #{_dfl2_impl.1} parent=64 // loop_footer
                  %s559 = sadd.s32 1, %s555
                $region85: #{_dfl2_impl.1} parent=64 // loop_footer_branch
                  %554 = sbr.rel target = $region81
                $region86: #{_dfl2_impl.1} parent=64 // loop_exit
                  _
              $region65: #{_dfl2_impl.1} parent=31 // pred_fallthru
                _
            $region32: #{_dfl2_impl.1} parent=27 // pred_fallthru
              _
            // Predicated region
            $region33: #{_dfl2_impl.1} parent=27 // pred_check
              %p126 = pneg %p122
            $region34: #{_dfl2_impl.1} parent=27 // pred_check_branch
              %128 = sbr.rel (%p126) target = $region36
            $region35: #{_dfl2_impl.1} parent=27 // pred_region
              %s129 = sshllo.u32 0, %s118
              loop: start=0, step=1, limit=1
              $region37: #{_dfl2_impl.1} parent=35 // loop_pre_header
                _
              $region38: #{_dfl2_impl.1} parent=35 // loop_header
                %s131 = sphi 0, %s135
                %p132 = scmp.ge.s32.totalorder %s131, 1
                %s136 = sphi %s117, %s117
                %s137 = sphi %s109, %s109
              $region39: #{_dfl2_impl.1} parent=35 // loop_header_branch
                %134 = sbr.rel (%p132) target = $region43
              $region40: #{_dfl2_impl.1} parent=35 // loop_body
                %v138 = vld [vmem:[%s136] sm:%s129]
                %139 = vst [vmem:[%s137] sm:%s129] %v138
                %v140 = vld [vmem:[%s136 + $0x28] sm:%s129]
                %141 = vst [vmem:[%s137 + $0x18] sm:%s129] %v140
                %v142 = vld [vmem:[%s136 + $0x50] sm:%s129]
                %143 = vst [vmem:[%s137 + $0x30] sm:%s129] %v142
              $region41: #{_dfl2_impl.1} parent=35 // loop_footer
                %s135 = sadd.s32 1, %s131
              $region42: #{_dfl2_impl.1} parent=35 // loop_footer_branch
                %130 = sbr.rel target = $region38
              $region43: #{_dfl2_impl.1} parent=35 // loop_exit
                _
            $region36: #{_dfl2_impl.1} parent=27 // pred_fallthru
              _
          $region28: #{_dfl2_impl.1} parent=23 // pred_fallthru
            _
          %568 = vnop
        $region24: #{_dfl2_impl.1} parent=19 // pred_fallthru
          _
      $region20: #{_dfl2_impl.1} parent=5 // pred_fallthru
        _
      %p569 = scmp.le.s32.totalorder 1, %s8
      %p570 = scmp.lt.s32.totalorder %s8, 3
      %p571 = pnand %p569, %p570
      %p572 = pneg %p571
      // Predicated region
      $region87: #{_dfl2_impl.1} parent=5 // pred_check
        _
      $region88: #{_dfl2_impl.1} parent=5 // pred_check_branch
        %574 = sbr.rel (%p571) target = $region90
      $region89: #{_dfl2_impl.1} parent=5 // pred_region
        %s575 = ssub.s32 %s8, 1
        %s576 = sand.u32 %s42, 1
        %s577 = sand.u32 %s42, 1
        %s578 = smul.addr %s577, 72
        %s579 = scalar_lea.vmem [#allocation2], %s578
        // Predicated region
        $region91: #{_dfl2_impl.1} parent=89 // pred_check
          %p580 = pneg %p55
        $region92: #{_dfl2_impl.1} parent=89 // pred_check_branch
          %582 = sbr.rel (%p580) target = $region94
        $region93: #{_dfl2_impl.1} parent=89 // pred_region
          _
        $region94: #{_dfl2_impl.1} parent=89 // pred_fallthru
          _
        %p583 = pneg %p29
        %p584 = pneg %p26
        %s585 = sand.u32 %s42, 1
        %s586 = sand.u32 %s42, 1
        %s587 = smul.addr %s586, 72
        %s588 = scalar_lea.vmem [#allocation2], %s587
        %p589 = pneg %p55
        %p590 = pneg %p52
        %p591 = pneg %p81
        %p592 = pneg %p78
        %p593 = scmp.lt.s32.totalorder %s13, 1
        %s594 = scalar_select %p593, %s13, 1
        %s595 = smul.addr %s594, 8
        %s596 = scalar_lea.vmem %s2, %s595
        %s597 = smul.u32 3, %s13
        %s598 = ssub.s32 5, %s597
        %p599 = scmp.lt.s32.totalorder %s598, 3
        %s600 = scalar_select %p599, %s598, 3
        %s601 = smul.u32 384, %s600
        %p602 = scmp.lt.s32.totalorder %s13, 1
        %s603 = scalar_select %p602, %s13, 1
        %s604 = smul.addr %s603, 8
        %s605 = scalar_lea.vmem %s2, %s604
        %v606 = vld [vmem:[%s579] sm:$0xff]
        %v607 = vld [vmem:[%s579 + $0x8] sm:$0xff]
        %v608 = vld [vmem:[%s579 + $0x10] sm:$0xff]
        %v609 = vld [vmem:[%s579 + $0x18] sm:$0xff]
        %v610 = vld [vmem:[%s579 + $0x20] sm:$0xff]
        %v611 = vld [vmem:[%s579 + $0x28] sm:$0xff]
        %s612 = scalar_lea.vmem %s579, 48 [#allocation2]
        %v613 = vld [vmem:[%s612] ss:$8 sm:$0x7]
        %s614 = smul.u32 %s13, 384
        %v615 = vlaneseq
        %v616 = vand.u32 %v615, 127
        %v617 = vadd.s32 %v616, 128
        %v618 = vadd.s32 %v616, 256
        %v619 = vstv %s614
        %v620 = vadd.s32 %v619, %v616
        %v621 = vadd.s32 %v619, %v617
        %v622 = vadd.s32 %v619, %v618
        %vm623 = vcmp.lt.s32.totalorder %v620, 600
        %vm624 = vcmp.lt.s32.totalorder %v621, 600
        %vm625 = vcmp.lt.s32.totalorder %v622, 600
        %v626 = vlaneseq
        %v627 = vshrl.u32 %v626, 7
        %v628 = vadd.s32 %v627, 8
        %v629 = vsub.f32 %v613, 0.5
        %v630 = vceil.f32 %v629
        %v631 = vmax.f32 %v630, 0.0
        %v632 = vmin.f32 %v631, 15.0
        %v633 = vcvt.f32.s32.to.zero.pseudo %v632
        %v634 = vlaneseq
        %v635 = vshrl.u32 %v634, 7
        %v636 = vsub.s32 0, %v635
        %v637 = vrot.slane %v633, %v636
        %v638 = vlaneseq
        %v639 = vshrl.u32 %v638, 7
        %v640 = vsub.s32 1, %v639
        %v641 = vrot.slane %v633, %v640
        %v642 = vlaneseq
        %v643 = vshrl.u32 %v642, 7
        %v644 = vsub.s32 2, %v643
        %v645 = vrot.slane %v633, %v644
        %vm646 = vcmp.eq.s32.totalorder %v627, %v637
        %vm647 = vcmp.eq.s32.totalorder %v627, %v641
        %vm648 = vcmp.eq.s32.totalorder %v627, %v645
        %vm649 = vcmp.eq.s32.totalorder %v628, %v637
        %vm650 = vcmp.eq.s32.totalorder %v628, %v641
        %vm651 = vcmp.eq.s32.totalorder %v628, %v645
        %v652 = vmax.f32 %v606, %v609
        %v653 = vrot.slane %v652, 4
        %v654 = vmax.f32 %v652, %v653
        %v655 = vrot.slane %v654, 2
        %v656 = vmax.f32 %v654, %v655
        %v657 = vrot.slane %v656, 1
        %v658 = vmax.f32 %v656, %v657
        %v659 = vmax.f32 %v607, %v610
        %v660 = vrot.slane %v659, 4
        %v661 = vmax.f32 %v659, %v660
        %v662 = vrot.slane %v661, 2
        %v663 = vmax.f32 %v661, %v662
        %v664 = vrot.slane %v663, 1
        %v665 = vmax.f32 %v663, %v664
        %v666 = vmax.f32 %v608, %v611
        %v667 = vrot.slane %v666, 4
        %v668 = vmax.f32 %v666, %v667
        %v669 = vrot.slane %v668, 2
        %v670 = vmax.f32 %v668, %v669
        %v671 = vrot.slane %v670, 1
        %v672 = vmax.f32 %v670, %v671
        %v673 = vsub.f32 %v606, %v658
        %v674 = vsub.f32 %v607, %v665
        %v675 = vsub.f32 %v608, %v672
        %v676 = vsub.f32 %v609, %v658
        %v677 = vsub.f32 %v610, %v665
        %v678 = vsub.f32 %v611, %v672
        %v679 = vmul.f32 %v673, 1.442695
        %v680 = vpow.pop %v679
        %v681 = vmul.f32 %v674, 1.442695
        %v682 = vpow.pop %v681
        %v683 = vmul.f32 %v675, 1.442695
        %v684 = vpow.pop %v683
        %v685 = vmul.f32 %v676, 1.442695
        %v686 = vpow.pop %v685
        %v687 = vmul.f32 %v677, 1.442695
        %v688 = vpow.pop %v687
        %v689 = vmul.f32 %v678, 1.442695
        %v690 = vpow.pop %v689
        %v691 = vadd.f32 %v680, %v686
        %v692 = vrot.slane %v691, 4
        %v693 = vadd.f32 %v691, %v692
        %v694 = vrot.slane %v693, 2
        %v695 = vadd.f32 %v693, %v694
        %v696 = vrot.slane %v695, 1
        %v697 = vadd.f32 %v695, %v696
        %v698 = vadd.f32 %v682, %v688
        %v699 = vrot.slane %v698, 4
        %v700 = vadd.f32 %v698, %v699
        %v701 = vrot.slane %v700, 2
        %v702 = vadd.f32 %v700, %v701
        %v703 = vrot.slane %v702, 1
        %v704 = vadd.f32 %v702, %v703
        %v705 = vadd.f32 %v684, %v690
        %v706 = vrot.slane %v705, 4
        %v707 = vadd.f32 %v705, %v706
        %v708 = vrot.slane %v707, 2
        %v709 = vadd.f32 %v707, %v708
        %v710 = vrot.slane %v709, 1
        %v711 = vadd.f32 %v709, %v710
        %v712 = vlog2.pop %v697
        %v713 = vmul.f32 %v712, 0.6931472
        %v714 = vlog2.pop %v704
        %v715 = vmul.f32 %v714, 0.6931472
        %v716 = vlog2.pop %v711
        %v717 = vmul.f32 %v716, 0.6931472
        %v718 = vsub.f32 %v673, %v713
        %v719 = vsub.f32 %v674, %v715
        %v720 = vsub.f32 %v675, %v717
        %v721 = vsub.f32 %v676, %v713
        %v722 = vsub.f32 %v677, %v715
        %v723 = vsub.f32 %v678, %v717
        %v724 = vrcp.pop %v697
        %v725 = vrcp.pop %v704
        %v726 = vrcp.pop %v711
        %v727 = vmul.f32 %v680, %v724
        %v728 = vmul.f32 %v682, %v725
        %v729 = vmul.f32 %v684, %v726
        %v730 = vmul.f32 %v686, %v724
        %v731 = vmul.f32 %v688, %v725
        %v732 = vmul.f32 %v690, %v726
        %vm733 = vcmp.lt.f32.partialorder %v718, -15.942385
        %vm734 = vcmp.lt.f32.partialorder %v719, -15.942385
        %vm735 = vcmp.lt.f32.partialorder %v720, -15.942385
        %vm736 = vcmp.lt.f32.partialorder %v721, -15.942385
        %vm737 = vcmp.lt.f32.partialorder %v722, -15.942385
        %vm738 = vcmp.lt.f32.partialorder %v723, -15.942385
        %vm739 = vcmp.gt.f32.partialorder %v718, -1.192093e-07
        %vm740 = vcmp.gt.f32.partialorder %v719, -1.192093e-07
        %vm741 = vcmp.gt.f32.partialorder %v720, -1.192093e-07
        %vm742 = vcmp.gt.f32.partialorder %v721, -1.192093e-07
        %vm743 = vcmp.gt.f32.partialorder %v722, -1.192093e-07
        %vm744 = vcmp.gt.f32.partialorder %v723, -1.192093e-07
        %v745 = vmul.f32 %v727, %v718
        %v746 = vmul.f32 %v728, %v719
        %v747 = vmul.f32 %v729, %v720
        %v748 = vmul.f32 %v730, %v721
        %v749 = vmul.f32 %v731, %v722
        %v750 = vmul.f32 %v732, %v723
        %v751 = vsel %vm739, -1.1920928e-07, %v745
        %v752 = vsel %vm740, -1.1920928e-07, %v746
        %v753 = vsel %vm741, -1.1920928e-07, %v747
        %v754 = vsel %vm742, -1.1920928e-07, %v748
        %v755 = vsel %vm743, -1.1920928e-07, %v749
        %v756 = vsel %vm744, -1.1920928e-07, %v750
        %v757 = vsel %vm733, -1.9004804e-06, %v751
        %v758 = vsel %vm734, -1.9004804e-06, %v752
        %v759 = vsel %vm735, -1.9004804e-06, %v753
        %v760 = vsel %vm736, -1.9004804e-06, %v754
        %v761 = vsel %vm737, -1.9004804e-06, %v755
        %v762 = vsel %vm738, -1.9004804e-06, %v756
        %v763 = vmul.f32 %v757, 6.25e-07
        %v764 = vmul.f32 %v758, 6.25e-07
        %v765 = vmul.f32 %v759, 6.25e-07
        %v766 = vmul.f32 %v760, 6.25e-07
        %v767 = vmul.f32 %v761, 6.25e-07
        %v768 = vmul.f32 %v762, 6.25e-07
        %v769 = vsel %vm646, %v718, 0.0
        %v770 = vsel %vm647, %v719, 0.0
        %v771 = vsel %vm648, %v720, 0.0
        %v772 = vsel %vm649, %v721, 0.0
        %v773 = vsel %vm650, %v722, 0.0
        %v774 = vsel %vm651, %v723, 0.0
        %v775 = vsub.f32 %v763, %v769
        %v776 = vsub.f32 %v764, %v770
        %v777 = vsub.f32 %v765, %v771
        %v778 = vsub.f32 %v766, %v772
        %v779 = vsub.f32 %v767, %v773
        %v780 = vsub.f32 %v768, %v774
        %v781 = vadd.f32 %v775, %v778
        %v782 = vrot.slane %v781, 4
        %v783 = vadd.f32 %v781, %v782
        %v784 = vrot.slane %v783, 2
        %v785 = vadd.f32 %v783, %v784
        %v786 = vrot.slane %v785, 1
        %v787 = vadd.f32 %v785, %v786
        %v788 = vadd.f32 %v776, %v779
        %v789 = vrot.slane %v788, 4
        %v790 = vadd.f32 %v788, %v789
        %v791 = vrot.slane %v790, 2
        %v792 = vadd.f32 %v790, %v791
        %v793 = vrot.slane %v792, 1
        %v794 = vadd.f32 %v792, %v793
        %v795 = vadd.f32 %v777, %v780
        %v796 = vrot.slane %v795, 4
        %v797 = vadd.f32 %v795, %v796
        %v798 = vrot.slane %v797, 2
        %v799 = vadd.f32 %v797, %v798
        %v800 = vrot.slane %v799, 1
        %v801 = vadd.f32 %v799, %v800
        %v802 = vsel %vm623, %v787, 0.0
        %v803 = vsel %vm624, %v794, 0.0
        %v804 = vsel %vm625, %v801, 0.0
        %v805 = vadd.f32 %v802, %v803
        %v806 = vadd.f32 %v805, %v804
        %vm807 = vcmp.eq.s32.totalorder %v627, 0
        %v808 = vsel %vm807, %v806, 0.0
        %809 = vst [vmem:[%s605] sm:$0xff] %v808
        %p810 = scmp.lt.s32.totalorder %s13, 1
        %s811 = scalar_select %p810, %s13, 1
        %s812 = smul.addr %s811, 8
        %s813 = scalar_lea.vmem %s2, %s812
        // Predicated region
        $region95: #{_dfl2_impl.1} parent=89 // pred_check
          %p814 = pneg %p78
        $region96: #{_dfl2_impl.1} parent=89 // pred_check_branch
          %816 = sbr.rel (%p814) target = $region98
        $region97: #{_dfl2_impl.1} parent=89 // pred_region
          _
        $region98: #{_dfl2_impl.1} parent=89 // pred_fallthru
          _
      $region90: #{_dfl2_impl.1} parent=5 // pred_fallthru
        _
      %p817 = scmp.le.s32.totalorder 2, %s8
      // Predicated region
      $region99: #{_dfl2_impl.1} parent=5 // pred_check
        %p818 = pneg %p817
      $region100: #{_dfl2_impl.1} parent=5 // pred_check_branch
        %820 = sbr.rel (%p818) target = $region102
      $region101: #{_dfl2_impl.1} parent=5 // pred_region
        %s821 = ssub.s32 %s8, 2
        // Predicated region
        $region103: #{_dfl2_impl.1} parent=101 // pred_check
          %p822 = pneg %p84
        $region104: #{_dfl2_impl.1} parent=101 // pred_check_branch
          %824 = sbr.rel (%p822) target = $region106
        $region105: #{_dfl2_impl.1} parent=101 // pred_region
          %p825 = scmp.lt.s32.totalorder %s14, 1
          %s826 = scalar_select %p825, %s14, 1
          %s827 = smul.addr %s826, 8
          %s828 = scalar_lea.vmem %s2, %s827
        $region106: #{_dfl2_impl.1} parent=101 // pred_fallthru
          _
      $region102: #{_dfl2_impl.1} parent=5 // pred_fallthru
        _
    $region6: #{_dfl2_impl.1} parent=1 // loop_footer
      %s12 = sadd.s32 1, %s8
    $region7: #{_dfl2_impl.1} parent=1 // loop_footer_branch
      %7 = sbr.rel target = $region3
    $region8: #{_dfl2_impl.1} parent=1 // loop_exit
      _

</llo_original>
